<compile_context>
chip_gen: v5e
topology: v5e:2x2
jax: 0.10.0
libtpu: 0.0.40
codegen_flags: <defaults>
</compile_context>

<pallas_src>
import functools

import jax
import jax.numpy as jnp
from jax.experimental import pallas as pl
from jax.experimental.pallas import tpu as pltpu


def _round_up(v, m):
    return (v + m - 1) // m * m


def _fused_sage_kernel(a_ref, x_ref, w_ref, b_ref, o_ref, h_scr, *, f_pad):
    """One grid step == one SAGEConv('mean') layer.

    a_ref : (Np, Np)       bf16 row-normalized adjacency (VMEM-resident, single-buffered)
    x_ref : (Np, Fp)       bf16 padded input features (single-buffered)
    w_ref : (2*Fp, Fp)     bf16 fused weights for this layer: rows [0:Fp]=W_self,
                           rows [Fp:2Fp]=W_neigh (layer axis squeezed)
    b_ref : (1, Fp)        f32 bias for this layer (layer axis squeezed)
    o_ref : (Np, Fp)       f32 output (written only at the last layer)
    h_scr : (Np, 2*Fp)     bf16 persistent scratch: [:, :Fp]=H, [:, Fp:]=A@H
    """
    l = pl.program_id(0)
    n_layers = pl.num_programs(0)

    # Load the input features into the resident activation buffer once.
    @pl.when(l == 0)
    def _():
        h_scr[:, :f_pad] = x_ref[...]

    a = a_ref[...]                                   # (Np, Np) bf16

    # Mean over in-neighbors: row-normalized A @ H  (MXU, f32 accumulation).
    h_neigh = jnp.dot(a, h_scr[:, :f_pad], preferred_element_type=jnp.float32)
    # Store neighbor aggregate into the right half of the wide scratch so the
    # fused matmul below reads [H | A@H] directly (no concatenate / casts).
    h_scr[:, f_pad:] = h_neigh.astype(jnp.bfloat16)

    # Fused self + neighbor transform: [H | A@H] @ [W_self ; W_neigh] + bias.
    out = jnp.dot(h_scr[...], w_ref[...], preferred_element_type=jnp.float32)
    out = out + b_ref[...]

    is_last = l == n_layers - 1

    @pl.when(jnp.logical_not(is_last))
    def _():
        # ReLU between layers; dropout is identity in eval mode.
        h_scr[:, :f_pad] = jnp.maximum(out, 0.0).astype(jnp.bfloat16)

    @pl.when(is_last)
    def _():
        o_ref[...] = out


def _fused_forward_call(a_pad, x_pad, w_stack, b_stack):
    n_pad, f_pad = x_pad.shape
    n_layers = w_stack.shape[0]

    kernel = functools.partial(_fused_sage_kernel, f_pad=f_pad)

    cost = pl.CostEstimate(
        flops=int(n_layers * (2 * n_pad * n_pad * f_pad
                              + 2 * n_pad * (2 * f_pad) * f_pad)),
        transcendentals=0,
        bytes_accessed=int(a_pad.size * 2 + x_pad.size * 2
                           + w_stack.size * 2 + b_stack.size * 4
                           + n_pad * f_pad * 4),
    )

    # VMEM budget matching the actual buffering below:
    #   A, X, out single-buffered; W, b double-buffered; bf16 wide scratch;
    #   f32 temporaries (h_neigh, out) + headroom for matmul staging.
    vmem_est = int(
        a_pad.size * 2                      # A  (1 buffer, bf16)
        + x_pad.size * 2                    # X  (1 buffer, bf16)
        + 2 * (2 * f_pad * f_pad) * 2       # W  (2 buffers, bf16)
        + 2 * f_pad * 4                     # b  (2 buffers, f32)
        + n_pad * f_pad * 4                 # out (1 buffer, f32)
        + n_pad * (2 * f_pad) * 2           # persistent bf16 activation scratch
        + 2 * n_pad * f_pad * 4             # f32 temporaries inside the body
    ) + (4 << 20)

    try:
        info = pltpu.get_tpu_info()
        vmem_cap = int(getattr(info, "vmem_capacity_bytes", 64 << 20))
    except Exception:  # pragma: no cover - conservative fallback
        vmem_cap = 64 << 20
    vmem_limit = min(max(vmem_est, 16 << 20), vmem_cap - (8 << 20))

    return pl.pallas_call(
        kernel,
        out_shape=jax.ShapeDtypeStruct((n_pad, f_pad), jnp.float32),
        grid_spec=pltpu.PrefetchScalarGridSpec(
            num_scalar_prefetch=0,
            grid=(n_layers,),
            in_specs=[
                # A: resident across all layers -> single-buffered.
                pl.BlockSpec((n_pad, n_pad), lambda l: (0, 0),
                             pipeline_mode=pl.Buffered(1)),
                # X: read only at layer 0 -> single-buffered.
                pl.BlockSpec((n_pad, f_pad), lambda l: (0, 0),
                             pipeline_mode=pl.Buffered(1)),
                # Per-layer fused weights / bias: streamed, layer axis squeezed.
                pl.BlockSpec((pl.Squeezed(), 2 * f_pad, f_pad),
                             lambda l: (l, 0, 0)),
                pl.BlockSpec((pl.Squeezed(), 1, f_pad),
                             lambda l: (l, 0, 0)),
            ],
            out_specs=pl.BlockSpec((n_pad, f_pad), lambda l: (0, 0),
                                   pipeline_mode=pl.Buffered(1)),
            scratch_shapes=[pltpu.VMEM((n_pad, 2 * f_pad), jnp.bfloat16)],
        ),
        compiler_params=pltpu.CompilerParams(
            dimension_semantics=("arbitrary",),   # layers are sequentially dependent
            vmem_limit_bytes=vmem_limit,
        ),
        cost_estimate=cost,
    )(a_pad, x_pad, w_stack, b_stack)


def model_forward(a_norm, x, params):
    """Model.forward: stack of SAGEConv('mean') layers, ReLU (+ eval dropout) between."""
    n, in_feats = x.shape
    n_layers = len(params)
    n_classes = params[-1][0].shape[1]

    # Pad node and feature dims to 128 so all MXU tiles / stores are lane-dense.
    f_max = max(max(ws.shape[0], ws.shape[1]) for ws, _, _ in params)
    f_pad = _round_up(max(f_max, in_feats), 128)
    n_pad = _round_up(n, 128)

    a_pad = jnp.zeros((n_pad, n_pad), jnp.bfloat16)
    a_pad = a_pad.at[:n, :n].set(a_norm.astype(jnp.bfloat16))
    x_pad = jnp.zeros((n_pad, f_pad), jnp.bfloat16)
    x_pad = x_pad.at[:n, :in_feats].set(x.astype(jnp.bfloat16))

    # Stacked, padded, fused weights: rows [0:Fp]=W_self, rows [Fp:2Fp]=W_neigh.
    # Pre-cast to bf16 on the host (only per-layer streamed DMA); bias stays f32.
    w_stack = jnp.zeros((n_layers, 2 * f_pad, f_pad), jnp.float32)
    b_stack = jnp.zeros((n_layers, 1, f_pad), jnp.float32)
    for l, (w_self, w_neigh, bias) in enumerate(params):
        fi, fo = w_self.shape
        w_stack = w_stack.at[l, :fi, :fo].set(w_self)
        w_stack = w_stack.at[l, f_pad:f_pad + fi, :fo].set(w_neigh)
        b_stack = b_stack.at[l, 0, :fo].set(bias)
    w_stack = w_stack.astype(jnp.bfloat16)

    out_pad = _fused_forward_call(a_pad, x_pad, w_stack, b_stack)
    return out_pad[:n, :n_classes]


def reference_forward(a_norm, x, params):
    """Pure-JAX f32 reference for the same forward pass."""
    h = x
    for l, (w_self, w_neigh, bias) in enumerate(params):
        h_neigh = a_norm @ h
        h = h @ w_self + h_neigh @ w_neigh + bias
        if l != len(params) - 1:
            h = jnp.maximum(h, 0.0)
    return h


def init_params(key, in_feats, n_hidden, n_classes, n_layers):
    """Deterministic parameter init matching the module's layer shapes."""
    dims = [in_feats] + [n_hidden] * (n_layers - 1) + [n_classes]
    params = []
    for l in range(n_layers):
        f_in, f_out = dims[l], dims[l + 1]
        key, k1, k2 = jax.random.split(key, 3)
        scale = (2.0 / (f_in + f_out)) ** 0.5
        w_self = scale * jax.random.normal(k1, (f_in, f_out), jnp.float32)
        w_neigh = scale * jax.random.normal(k2, (f_in, f_out), jnp.float32)
        bias = jnp.zeros((f_out,), jnp.float32)
        params.append((w_self, w_neigh, bias))
    return params


def build_mean_adjacency(key, n_nodes, edge_prob=0.3):
    """Dense random graph. A[i, j] = 1 means edge j -> i (j is an in-neighbor of i);
    rows are normalized by in-degree so A @ H is the mean over in-neighbors
    (0 if in-degree is 0), matching DGL's 'mean' aggregator convention."""
    adj = (jax.random.uniform(key, (n_nodes, n_nodes)) < edge_prob).astype(jnp.float32)
    adj = adj * (1.0 - jnp.eye(n_nodes, dtype=jnp.float32))  # no self loops
    in_deg = adj.sum(axis=1, keepdims=True)
    return jnp.where(in_deg > 0, adj / jnp.maximum(in_deg, 1.0), 0.0)


if __name__ == "__main__":
    # Small config consistent with the module's constructor.
    in_feats, n_hidden, n_classes, n_layers = 8, 32, 4, 3
    n_nodes = 16

    key = jax.random.PRNGKey(0)
    k_graph, k_feat, k_param = jax.random.split(key, 3)

    a_norm = build_mean_adjacency(k_graph, n_nodes)
    x = jax.random.normal(k_feat, (n_nodes, in_feats), jnp.float32)
    params = init_params(k_param, in_feats, n_hidden, n_classes, n_layers)

    out = model_forward(a_norm, x, params)
    out = jax.block_until_ready(out)
    assert out.shape == (n_nodes, n_classes), out.shape

    ref = reference_forward(a_norm, x, params)
    # bf16 matmul inputs (f32 accumulation) -> loose tolerance vs f32 reference.
    assert jnp.allclose(out, ref, rtol=1e-1, atol=1e-1), "mismatch vs f32 reference"

    print("KERNEL_OK")
</pallas_src>

<mosaic_0001>
module attributes {stable_mosaic.version = 11 : i64} {
  func.func @_fused_sage_kernel(%arg0: i32, %arg1: memref<128x128xbf16, #tpu.memory_space<vmem>>, %arg2: memref<128x128xbf16, #tpu.memory_space<vmem>>, %arg3: memref<1x256x128xbf16, #tpu.memory_space<vmem>>, %arg4: memref<1x1x128xf32, #tpu.memory_space<vmem>>, %arg5: memref<128x128xf32, #tpu.memory_space<vmem>>, %arg6: memref<128x256xbf16, #tpu.memory_space<vmem>>) attributes {dimension_semantics = [#tpu.dimension_semantics<arbitrary>], iteration_bounds = array<i64: 3>, scalar_prefetch = 0 : i64, scratch_operands = 1 : i64, tpu.core_type = #tpu.core_type<tc>, window_params = [{pipeline_mode = #tpu.pipeline_mode<synchronous>, transform_indices = @transform_0, window_bounds = array<i64: 128, 128>}, {pipeline_mode = #tpu.pipeline_mode<synchronous>, transform_indices = @transform_1, window_bounds = array<i64: 128, 128>}, {transform_indices = @transform_2, window_bounds = array<i64: 1, 256, 128>}, {transform_indices = @transform_3, window_bounds = array<i64: 1, 1, 128>}, {pipeline_mode = #tpu.pipeline_mode<synchronous>, transform_indices = @transform_4, window_bounds = array<i64: 128, 128>}]} {
    %c0_i32 = arith.constant 0 : i32
    %0 = arith.cmpi eq, %arg0, %c0_i32 : i32
    %1 = arith.extui %0 : i1 to i32
    %c0_i32_0 = arith.constant 0 : i32
    %2 = arith.cmpi ne, %1, %c0_i32_0 : i32
    scf.if %2 {
      %c0_16 = arith.constant 0 : index
      %c0_17 = arith.constant 0 : index
      %22 = vector.load %arg2[%c0_16, %c0_17] : memref<128x128xbf16, #tpu.memory_space<vmem>>, vector<128x128xbf16>
      %c0_18 = arith.constant 0 : index
      %c0_19 = arith.constant 0 : index
      %23 = vector.load %arg6[%c0_18, %c0_19] : memref<128x256xbf16, #tpu.memory_space<vmem>>, vector<128x128xbf16>
      tpu.vector_store %arg6[%c0_18, %c0_19], %22 {strides = array<i32>} : memref<128x256xbf16, #tpu.memory_space<vmem>>, vector<128x128xbf16>,
    } else {
    }
    %c0 = arith.constant 0 : index
    %c0_1 = arith.constant 0 : index
    %3 = vector.load %arg1[%c0, %c0_1] : memref<128x128xbf16, #tpu.memory_space<vmem>>, vector<128x128xbf16>
    %c0_2 = arith.constant 0 : index
    %c0_3 = arith.constant 0 : index
    %4 = vector.load %arg6[%c0_2, %c0_3] : memref<128x256xbf16, #tpu.memory_space<vmem>>, vector<128x128xbf16>
    %cst = arith.constant dense<0.000000e+00> : vector<128x128xf32>
    %5 = tpu.matmul %3, %4, %cst {dimension_numbers = #tpu.dot_dimension_numbers<[1], [0], [0], [1], [0, 0, 1, 1], [], []>} : vector<128x128xbf16>, vector<128x128xbf16>, vector<128x128xf32> -> vector<128x128xf32>
    %6 = arith.truncf %5 : vector<128x128xf32> to vector<128x128xbf16>
    %c0_4 = arith.constant 0 : index
    %c128 = arith.constant 128 : index
    %7 = vector.load %arg6[%c0_4, %c128] : memref<128x256xbf16, #tpu.memory_space<vmem>>, vector<128x128xbf16>
    tpu.vector_store %arg6[%c0_4, %c128], %6 {strides = array<i32>} : memref<128x256xbf16, #tpu.memory_space<vmem>>, vector<128x128xbf16>,
    %c0_5 = arith.constant 0 : index
    %c0_6 = arith.constant 0 : index
    %8 = vector.load %arg6[%c0_5, %c0_6] : memref<128x256xbf16, #tpu.memory_space<vmem>>, vector<128x256xbf16>
    %c0_7 = arith.constant 0 : index
    %c0_8 = arith.constant 0 : index
    %c0_9 = arith.constant 0 : index
    %9 = vector.load %arg3[%c0_7, %c0_8, %c0_9] : memref<1x256x128xbf16, #tpu.memory_space<vmem>>, vector<1x256x128xbf16>
    %10 = vector.shape_cast %9 : vector<1x256x128xbf16> to vector<256x128xbf16>
    %cst_10 = arith.constant dense<0.000000e+00> : vector<128x128xf32>
    %11 = tpu.matmul %8, %10, %cst_10 {dimension_numbers = #tpu.dot_dimension_numbers<[1], [0], [0], [1], [0, 0, 1, 1], [], []>} : vector<128x256xbf16>, vector<256x128xbf16>, vector<128x128xf32> -> vector<128x128xf32>
    %c0_11 = arith.constant 0 : index
    %c0_12 = arith.constant 0 : index
    %c0_13 = arith.constant 0 : index
    %12 = vector.load %arg4[%c0_11, %c0_12, %c0_13] : memref<1x1x128xf32, #tpu.memory_space<vmem>>, vector<1x1x128xf32>
    %13 = vector.shape_cast %12 : vector<1x1x128xf32> to vector<1x128xf32>
    %14 = vector.broadcast %13 : vector<1x128xf32> to vector<128x128xf32>
    %15 = arith.addf %11, %14 : vector<128x128xf32>
    %c2_i32 = arith.constant 2 : i32
    %16 = arith.cmpi eq, %arg0, %c2_i32 : i32
    %true = arith.constant true
    %17 = arith.xori %16, %true : i1
    %18 = arith.extui %17 : i1 to i32
    %c0_i32_14 = arith.constant 0 : i32
    %19 = arith.cmpi ne, %18, %c0_i32_14 : i32
    scf.if %19 {
      %cst_16 = arith.constant 0.000000e+00 : f32
      %22 = vector.broadcast %cst_16 : f32 to vector<128x128xf32>
      %23 = arith.maximumf %15, %22 : vector<128x128xf32>
      %24 = arith.truncf %23 : vector<128x128xf32> to vector<128x128xbf16>
      %c0_17 = arith.constant 0 : index
      %c0_18 = arith.constant 0 : index
      %25 = vector.load %arg6[%c0_17, %c0_18] : memref<128x256xbf16, #tpu.memory_space<vmem>>, vector<128x128xbf16>
      tpu.vector_store %arg6[%c0_17, %c0_18], %24 {strides = array<i32>} : memref<128x256xbf16, #tpu.memory_space<vmem>>, vector<128x128xbf16>,
    } else {
    }
    %20 = arith.extui %16 : i1 to i32
    %c0_i32_15 = arith.constant 0 : i32
    %21 = arith.cmpi ne, %20, %c0_i32_15 : i32
    scf.if %21 {
      %c0_16 = arith.constant 0 : index
      %c0_17 = arith.constant 0 : index
      %22 = vector.load %arg5[%c0_16, %c0_17] : memref<128x128xf32, #tpu.memory_space<vmem>>, vector<128x128xf32>
      tpu.vector_store %arg5[%c0_16, %c0_17], %15 {strides = array<i32>} : memref<128x128xf32, #tpu.memory_space<vmem>>, vector<128x128xf32>,
    } else {
    }
    return
  }
  func.func @transform_0(%arg0: i32) -> (i32, i32) {
    %c0_i32 = arith.constant 0 : i32
    %c0_i32_0 = arith.constant 0 : i32
    %c0_i32_1 = arith.constant 0 : i32
    return %c0_i32, %c0_i32_0 : i32, i32
  }
  func.func @transform_1(%arg0: i32) -> (i32, i32) {
    %c0_i32 = arith.constant 0 : i32
    %c0_i32_0 = arith.constant 0 : i32
    %c0_i32_1 = arith.constant 0 : i32
    return %c0_i32, %c0_i32_0 : i32, i32
  }
  func.func @transform_2(%arg0: i32) -> (i32, i32, i32) {
    %c0_i32 = arith.constant 0 : i32
    %c0_i32_0 = arith.constant 0 : i32
    %c0_i32_1 = arith.constant 0 : i32
    return %arg0, %c0_i32, %c0_i32_0 : i32, i32, i32
  }
  func.func @transform_3(%arg0: i32) -> (i32, i32, i32) {
    %c0_i32 = arith.constant 0 : i32
    %c0_i32_0 = arith.constant 0 : i32
    %c0_i32_1 = arith.constant 0 : i32
    return %arg0, %c0_i32, %c0_i32_0 : i32, i32, i32
  }
  func.func @transform_4(%arg0: i32) -> (i32, i32) {
    %c0_i32 = arith.constant 0 : i32
    %c0_i32_0 = arith.constant 0 : i32
    %c0_i32_1 = arith.constant 0 : i32
    return %c0_i32, %c0_i32_0 : i32, i32
  }
}

</mosaic_0001>

<llo_original>
// kernel: tpu_custom_call.1
$region0: #{tpu_custom_call.1}
  #allocation0 [shape = 'u32[]', space=smem, size = 0x4, offset = 0x4, fixed_abs, tag = 'smem constant byte address 0x4 - core index']
  #allocation1 [shape = 'u32[72,128]{1,0:T(1,128)}', space=vmem, size = 0x9000, scoped, tag = 'internal scratch']
  #allocation2 [shape = 'bf16[128,256]{1,0:T(8,128)(2,1)}', space=vmem, size = 0x10000, scoped, tag = 'scratch operand']
  %s0 = inlined_call_operand.hbm [shape: bf16[128,128], index: 0, kind: input, shape index: {}]
  %s1 = inlined_call_operand.hbm [shape: bf16[128,128], index: 1, kind: input, shape index: {}]
  %s2 = inlined_call_operand.hbm [shape: bf16[3,256,128], index: 2, kind: input, shape index: {}]
  %s3 = inlined_call_operand.hbm [shape: f32[3,1,128], index: 3, kind: input, shape index: {}]
  %s4 = inlined_call_operand.hbm [shape: f32[128,128], index: 4, kind: output, shape index: {}]
  %s5 = sld [smem:[#allocation0]]
  $region77: #{tpu_custom_call.1} parent=0
    _
  %s7 = ssub.s32 1, %s5
  %s8 = scalar_select 0, %s7, %s5
  $region1: #{tpu_custom_call.1} parent=0
    #allocation3 [shape = 'u8[32768]{0}', space=vmem, size = 0x8000, scoped, tag = 'input window, operand 0, single buffered']
    #allocation4 [shape = 's32[2]{0}', space=sflag, size = 0x8, scoped, tag = 'scoped memory for tpu_custom_call.1']
    #allocation5 [shape = 's32[2]{0}', space=sflag, size = 0x8, scoped, tag = 'scoped memory for tpu_custom_call.1']
    #allocation6 [shape = 'u8[32768]{0}', space=vmem, size = 0x8000, scoped, tag = 'input window, operand 1, single buffered']
    #allocation7 [shape = 's32[1]{0}', space=sflag, size = 0x4, scoped, tag = 'scoped memory for tpu_custom_call.1']
    #allocation8 [shape = 'u8[131072]{0}', space=vmem, size = 0x20000, scoped, tag = 'input window, operand 2']
    #allocation9 [shape = 'u8[1024]{0}', space=vmem, size = 0x400, scoped, tag = 'input window, operand 3']
    #allocation10 [shape = 'u8[65536]{0}', space=vmem, size = 0x10000, scoped, tag = 'output window, operand 0, single buffered']
    %9 = vsyncpa [#allocation4], 0
    %10 = vsyncpa [#allocation7], 0
    %11 = vsyncpa [#allocation5], 0
    loop: start=0, step=1, limit=5
    $region2: #{tpu_custom_call.1} parent=1 // loop_pre_header
      _
    $region3: #{tpu_custom_call.1} parent=1 // loop_header
      %s13 = sphi 0, %s17
      %p14 = scmp.ge.s32.totalorder %s13, 5
      %s21 = sphi 0, %s21
      %s23 = sphi 0, %s21
      %s24 = sphi 0, %s23
      %s38 = sphi 0, %s24
      %s42 = sphi 0, %s42
      %s44 = sphi 0, %s42
      %s45 = sphi 0, %s44
      %s59 = sphi 0, %s45
      %s65 = sphi 0, %s67
      %s68 = sphi 0, %s65
      %s69 = sphi 0, %s68
      %s85 = sphi 0, %s69
      %s91 = sphi 0, %s93
      %s94 = sphi 0, %s91
      %s95 = sphi 0, %s94
      %s111 = sphi 0, %s95
      %s115 = sphi 0, %s115
      %s117 = sphi 0, %s115
      %s118 = sphi 0, %s117
      %s132 = sphi 0, %s118
    $region4: #{tpu_custom_call.1} parent=1 // loop_header_branch
      %16 = sbr.rel (%p14) target = $region8
    $region5: #{tpu_custom_call.1} parent=1 // loop_body
      %s18 = ssub.s32 %s13, 1
      %s19 = ssub.s32 %s13, 2
      %s20 = sadd.s32 %s13, 1
      %s22 = sadd.s32 %s21, 1
      %p25 = scmp.eq.s32.totalorder %s13, 2
      %p26 = scmp.ne.s32.totalorder %s21, %s23
      %p27 = scmp.eq.s32.totalorder %s13, 0
      %p28 = por %p26, %p27
      %p29 = scmp.ne.s32.totalorder %s21, %s23
      %p30 = scmp.eq.s32.totalorder %s18, 2
      %p31 = por %p29, %p30
      %p32 = scmp.ne.s32.totalorder %s23, %s24
      %p33 = scmp.eq.s32.totalorder %s18, 0
      %p34 = por %p32, %p33
      %p35 = scmp.ne.s32.totalorder %s23, %s24
      %p36 = scmp.eq.s32.totalorder %s19, 2
      %p37 = por %p35, %p36
      %p39 = scmp.ne.s32.totalorder %s24, %s38
      %p40 = scmp.eq.s32.totalorder %s19, 0
      %p41 = por %p39, %p40
      %s43 = sadd.s32 %s42, 1
      %p46 = scmp.eq.s32.totalorder %s13, 2
      %p47 = scmp.ne.s32.totalorder %s42, %s44
      %p48 = scmp.eq.s32.totalorder %s13, 0
      %p49 = por %p47, %p48
      %p50 = scmp.ne.s32.totalorder %s42, %s44
      %p51 = scmp.eq.s32.totalorder %s18, 2
      %p52 = por %p50, %p51
      %p53 = scmp.ne.s32.totalorder %s44, %s45
      %p54 = scmp.eq.s32.totalorder %s18, 0
      %p55 = por %p53, %p54
      %p56 = scmp.ne.s32.totalorder %s44, %s45
      %p57 = scmp.eq.s32.totalorder %s19, 2
      %p58 = por %p56, %p57
      %p60 = scmp.ne.s32.totalorder %s45, %s59
      %p61 = scmp.eq.s32.totalorder %s19, 0
      %p62 = por %p60, %p61
      %s63 = ssub.s32 %s13, %s20
      %p64 = scmp.eq.s32.totalorder %s63, 0
      %s66 = sadd.s32 %s65, 1
      %s67 = scalar_select %p64, %s65, %s66
      %p70 = pneg %p64
      %p71 = scmp.eq.s32.totalorder %s13, 2
      %p72 = por %p70, %p71
      %p73 = scmp.ne.s32.totalorder %s65, %s68
      %p74 = scmp.eq.s32.totalorder %s13, 0
      %p75 = por %p73, %p74
      %p76 = scmp.ne.s32.totalorder %s65, %s68
      %p77 = scmp.eq.s32.totalorder %s18, 2
      %p78 = por %p76, %p77
      %p79 = scmp.ne.s32.totalorder %s68, %s69
      %p80 = scmp.eq.s32.totalorder %s18, 0
      %p81 = por %p79, %p80
      %p82 = scmp.ne.s32.totalorder %s68, %s69
      %p83 = scmp.eq.s32.totalorder %s19, 2
      %p84 = por %p82, %p83
      %p86 = scmp.ne.s32.totalorder %s69, %s85
      %p87 = scmp.eq.s32.totalorder %s19, 0
      %p88 = por %p86, %p87
      %s89 = ssub.s32 %s13, %s20
      %p90 = scmp.eq.s32.totalorder %s89, 0
      %s92 = sadd.s32 %s91, 1
      %s93 = scalar_select %p90, %s91, %s92
      %p96 = pneg %p90
      %p97 = scmp.eq.s32.totalorder %s13, 2
      %p98 = por %p96, %p97
      %p99 = scmp.ne.s32.totalorder %s91, %s94
      %p100 = scmp.eq.s32.totalorder %s13, 0
      %p101 = por %p99, %p100
      %p102 = scmp.ne.s32.totalorder %s91, %s94
      %p103 = scmp.eq.s32.totalorder %s18, 2
      %p104 = por %p102, %p103
      %p105 = scmp.ne.s32.totalorder %s94, %s95
      %p106 = scmp.eq.s32.totalorder %s18, 0
      %p107 = por %p105, %p106
      %p108 = scmp.ne.s32.totalorder %s94, %s95
      %p109 = scmp.eq.s32.totalorder %s19, 2
      %p110 = por %p108, %p109
      %p112 = scmp.ne.s32.totalorder %s95, %s111
      %p113 = scmp.eq.s32.totalorder %s19, 0
      %p114 = por %p112, %p113
      %s116 = sadd.s32 %s115, 1
      %p119 = scmp.eq.s32.totalorder %s13, 2
      %p120 = scmp.ne.s32.totalorder %s115, %s117
      %p121 = scmp.eq.s32.totalorder %s13, 0
      %p122 = por %p120, %p121
      %p123 = scmp.ne.s32.totalorder %s115, %s117
      %p124 = scmp.eq.s32.totalorder %s18, 2
      %p125 = por %p123, %p124
      %p126 = scmp.ne.s32.totalorder %s117, %s118
      %p127 = scmp.eq.s32.totalorder %s18, 0
      %p128 = por %p126, %p127
      %p129 = scmp.ne.s32.totalorder %s117, %s118
      %p130 = scmp.eq.s32.totalorder %s19, 2
      %p131 = por %p129, %p130
      %p133 = scmp.ne.s32.totalorder %s118, %s132
      %p134 = scmp.eq.s32.totalorder %s19, 0
      %p135 = por %p133, %p134
      %p136 = scmp.le.s32.totalorder 1, %s13
      %p137 = scmp.lt.s32.totalorder %s13, 4
      %p138 = pnand %p136, %p137
      %p139 = pneg %p138
      // Predicated region
      $region9: #{tpu_custom_call.1} parent=5 // pred_check
        _
      $region10: #{tpu_custom_call.1} parent=5 // pred_check_branch
        %141 = sbr.rel (%p138) target = $region12
      $region11: #{tpu_custom_call.1} parent=5 // pred_region
        %s142 = ssub.s32 %s13, 1
        // Predicated region
        $region13: #{tpu_custom_call.1} parent=11 // pred_check
          %p143 = pneg %p34
        $region14: #{tpu_custom_call.1} parent=11 // pred_check_branch
          %145 = sbr.rel (%p143) target = $region16
        $region15: #{tpu_custom_call.1} parent=11 // pred_region
          %147 = vsyncadd [#allocation4], 0
          %s148 = sshll.u32 %s0, 4
          %s149 = int_to_ptr.hbm [resolvable:$true] %s148
          %s150 = sshll.u32 [#allocation3], 4
          %s151 = int_to_ptr.vmem [resolvable:$true] %s150
          %156 = dma.hbm_to_vmem [thread:$0]  %s149, 1024, %s151, [#allocation4], 64, 64, 4
        $region16: #{tpu_custom_call.1} parent=11 // pred_fallthru
          _
        // Predicated region
        $region17: #{tpu_custom_call.1} parent=11 // pred_check
          %p157 = pneg %p55
        $region18: #{tpu_custom_call.1} parent=11 // pred_check_branch
          %159 = sbr.rel (%p157) target = $region20
        $region19: #{tpu_custom_call.1} parent=11 // pred_region
          %161 = vsyncadd [#allocation7], 0
          %s162 = sshll.u32 %s1, 4
          %s163 = int_to_ptr.hbm [resolvable:$true] %s162
          %s164 = sshll.u32 [#allocation6], 4
          %s165 = int_to_ptr.vmem [resolvable:$true] %s164
          %170 = dma.hbm_to_vmem [thread:$0]  %s163, 1024, %s165, [#allocation7], 64, 64, 4
        $region20: #{tpu_custom_call.1} parent=11 // pred_fallthru
          _
      $region12: #{tpu_custom_call.1} parent=5 // pred_fallthru
        _
      %p171 = scmp.lt.s32.totalorder %s13, 3
      // Predicated region
      $region21: #{tpu_custom_call.1} parent=5 // pred_check
        %p172 = pneg %p171
      $region22: #{tpu_custom_call.1} parent=5 // pred_check_branch
        %174 = sbr.rel (%p172) target = $region24
      $region23: #{tpu_custom_call.1} parent=5 // pred_region
        // Predicated region
        $region25: #{tpu_custom_call.1} parent=23 // pred_check
          %p175 = pneg %p75
        $region26: #{tpu_custom_call.1} parent=23 // pred_check_branch
          %177 = sbr.rel (%p175) target = $region28
        $region27: #{tpu_custom_call.1} parent=23 // pred_region
          %s178 = sand.u32 %s13, 1
          %s179 = scalar_lea.sflag [#allocation4], %s178
          %s180 = sand.u32 %s65, 1
          %s181 = smul.addr %s180, 128
          %s182 = scalar_lea.vmem [#allocation8], %s181
          %184 = vsyncadd %s179, 0
          %s185 = smul.addr %s13, 32
          %s186 = smul.addr %s185, 4
          %s187 = scalar_lea.hbm %s2, %s186
          %s188 = sshll.u32 %s187, 4
          %s189 = int_to_ptr.hbm [resolvable:$true] %s188
          %s190 = sshll.u32 %s182, 4
          %s191 = int_to_ptr.vmem [resolvable:$true] %s190
          %196 = dma.hbm_to_vmem [thread:$0]  %s189, 2048, %s191, %s179, 64, 64, 4
        $region28: #{tpu_custom_call.1} parent=23 // pred_fallthru
          _
        // Predicated region
        $region29: #{tpu_custom_call.1} parent=23 // pred_check
          %p197 = pneg %p101
        $region30: #{tpu_custom_call.1} parent=23 // pred_check_branch
          %199 = sbr.rel (%p197) target = $region32
        $region31: #{tpu_custom_call.1} parent=23 // pred_region
          %s200 = sand.u32 %s13, 1
          %s201 = scalar_lea.sflag [#allocation4], %s200
          %s202 = sand.u32 %s91, 1
          %s203 = scalar_lea.vmem [#allocation9], %s202
          %205 = vsyncadd %s201, 0
          %s206 = scalar_lea.hbm %s3, %s13
          %s208 = sshll.u32 %s206, 4
          %s209 = int_to_ptr.hbm [resolvable:$true] %s208
          %s210 = sshll.u32 %s203, 4
          %s211 = int_to_ptr.vmem [resolvable:$true] %s210
          %213 = dma.hbm_to_vmem [thread:$0]  %s209, 16, %s211, %s201
        $region32: #{tpu_custom_call.1} parent=23 // pred_fallthru
          _
      $region24: #{tpu_custom_call.1} parent=5 // pred_fallthru
        _
      %p214 = scmp.le.s32.totalorder 1, %s13
      %p215 = scmp.lt.s32.totalorder %s13, 4
      %p216 = pnand %p214, %p215
      %p217 = pneg %p216
      // Predicated region
      $region33: #{tpu_custom_call.1} parent=5 // pred_check
        _
      $region34: #{tpu_custom_call.1} parent=5 // pred_check_branch
        %219 = sbr.rel (%p216) target = $region36
      $region35: #{tpu_custom_call.1} parent=5 // pred_region
        %s220 = ssub.s32 %s13, 1
        // Predicated region
        $region37: #{tpu_custom_call.1} parent=35 // pred_check
          %p221 = pneg %p34
        $region38: #{tpu_custom_call.1} parent=35 // pred_check_branch
          %223 = sbr.rel (%p221) target = $region40
        $region39: #{tpu_custom_call.1} parent=35 // pred_region
          %225 = dma.done [#allocation4], 1024
        $region40: #{tpu_custom_call.1} parent=35 // pred_fallthru
          _
        // Predicated region
        $region41: #{tpu_custom_call.1} parent=35 // pred_check
          %p226 = pneg %p55
        $region42: #{tpu_custom_call.1} parent=35 // pred_check_branch
          %228 = sbr.rel (%p226) target = $region44
        $region43: #{tpu_custom_call.1} parent=35 // pred_region
          %230 = dma.done [#allocation7], 1024
        $region44: #{tpu_custom_call.1} parent=35 // pred_fallthru
          _
        %s231 = sand.u32 %s18, 1
        %s232 = scalar_lea.sflag [#allocation4], %s231
        %s233 = sand.u32 %s68, 1
        %s234 = smul.addr %s233, 128
        %s235 = scalar_lea.vmem [#allocation8], %s234
        // Predicated region
        $region45: #{tpu_custom_call.1} parent=35 // pred_check
          %p236 = pneg %p81
        $region46: #{tpu_custom_call.1} parent=35 // pred_check_branch
          %238 = sbr.rel (%p236) target = $region48
        $region47: #{tpu_custom_call.1} parent=35 // pred_region
          %240 = dma.done %s232, 2048
        $region48: #{tpu_custom_call.1} parent=35 // pred_fallthru
          _
        %s241 = sand.u32 %s18, 1
        %s242 = scalar_lea.sflag [#allocation4], %s241
        %s243 = sand.u32 %s94, 1
        %s244 = scalar_lea.vmem [#allocation9], %s243
        // Predicated region
        $region49: #{tpu_custom_call.1} parent=35 // pred_check
          %p245 = pneg %p107
        $region50: #{tpu_custom_call.1} parent=35 // pred_check_branch
          %247 = sbr.rel (%p245) target = $region52
        $region51: #{tpu_custom_call.1} parent=35 // pred_region
          %249 = dma.done %s242, 16
        $region52: #{tpu_custom_call.1} parent=35 // pred_fallthru
          _
        %p250 = pneg %p34
        %p251 = pneg %p31
        %p252 = pneg %p55
        %p253 = pneg %p52
        %s254 = sand.u32 %s18, 1
        %s255 = scalar_lea.sflag [#allocation4], %s254
        %s256 = sand.u32 %s68, 1
        %s257 = smul.addr %s256, 128
        %s258 = scalar_lea.vmem [#allocation8], %s257
        %p259 = pneg %p81
        %p260 = pneg %p78
        %s261 = sand.u32 %s18, 1
        %s262 = scalar_lea.sflag [#allocation4], %s261
        %s263 = sand.u32 %s94, 1
        %s264 = scalar_lea.vmem [#allocation9], %s263
        %p265 = pneg %p107
        %p266 = pneg %p104
        %p267 = pneg %p128
        %p268 = pneg %p125
        %p269 = scmp.eq.s32.totalorder %s18, 0
        // Predicated region
        $region53: #{tpu_custom_call.1} parent=35 // pred_check
          %p270 = pneg %p269
        $region54: #{tpu_custom_call.1} parent=35 // pred_check_branch
          %272 = sbr.rel (%p270) target = $region56
        $region55: #{tpu_custom_call.1} parent=35 // pred_region
          %v273 = vld [vmem:[#allocation6] sm:$0xf]
          %v274 = vld [vmem:[#allocation6 + $0x4] sm:$0xf]
          %v275 = vld [vmem:[#allocation6 + $0x8] sm:$0xf]
          %v276 = vld [vmem:[#allocation6 + $0xc] sm:$0xf]
          %v277 = vld [vmem:[#allocation6 + $0x10] sm:$0xf]
          %v278 = vld [vmem:[#allocation6 + $0x14] sm:$0xf]
          %v279 = vld [vmem:[#allocation6 + $0x18] sm:$0xf]
          %v280 = vld [vmem:[#allocation6 + $0x1c] sm:$0xf]
          %v281 = vld [vmem:[#allocation6 + $0x20] sm:$0xf]
          %v282 = vld [vmem:[#allocation6 + $0x24] sm:$0xf]
          %v283 = vld [vmem:[#allocation6 + $0x28] sm:$0xf]
          %v284 = vld [vmem:[#allocation6 + $0x2c] sm:$0xf]
          %v285 = vld [vmem:[#allocation6 + $0x30] sm:$0xf]
          %v286 = vld [vmem:[#allocation6 + $0x34] sm:$0xf]
          %v287 = vld [vmem:[#allocation6 + $0x38] sm:$0xf]
          %v288 = vld [vmem:[#allocation6 + $0x3c] sm:$0xf]
          %289 = vst [vmem:[#allocation2] sm:$0xf] %v273
          %290 = vst [vmem:[#allocation2 + $0x8] sm:$0xf] %v274
          %291 = vst [vmem:[#allocation2 + $0x10] sm:$0xf] %v275
          %292 = vst [vmem:[#allocation2 + $0x18] sm:$0xf] %v276
          %293 = vst [vmem:[#allocation2 + $0x20] sm:$0xf] %v277
          %294 = vst [vmem:[#allocation2 + $0x28] sm:$0xf] %v278
          %295 = vst [vmem:[#allocation2 + $0x30] sm:$0xf] %v279
          %296 = vst [vmem:[#allocation2 + $0x38] sm:$0xf] %v280
          %297 = vst [vmem:[#allocation2 + $0x40] sm:$0xf] %v281
          %298 = vst [vmem:[#allocation2 + $0x48] sm:$0xf] %v282
          %299 = vst [vmem:[#allocation2 + $0x50] sm:$0xf] %v283
          %300 = vst [vmem:[#allocation2 + $0x58] sm:$0xf] %v284
          %301 = vst [vmem:[#allocation2 + $0x60] sm:$0xf] %v285
          %302 = vst [vmem:[#allocation2 + $0x68] sm:$0xf] %v286
          %303 = vst [vmem:[#allocation2 + $0x70] sm:$0xf] %v287
          %304 = vst [vmem:[#allocation2 + $0x78] sm:$0xf] %v288
        $region56: #{tpu_custom_call.1} parent=35 // pred_fallthru
          _
        %v305 = vld [vmem:[#allocation3] sm:$0xf]
        %v306 = vld [vmem:[#allocation3 + $0x4] sm:$0xf]
        %v307 = vld [vmem:[#allocation3 + $0x8] sm:$0xf]
        %v308 = vld [vmem:[#allocation3 + $0xc] sm:$0xf]
        %v309 = vld [vmem:[#allocation3 + $0x10] sm:$0xf]
        %v310 = vld [vmem:[#allocation3 + $0x14] sm:$0xf]
        %v311 = vld [vmem:[#allocation3 + $0x18] sm:$0xf]
        %v312 = vld [vmem:[#allocation3 + $0x1c] sm:$0xf]
        %v313 = vld [vmem:[#allocation3 + $0x20] sm:$0xf]
        %v314 = vld [vmem:[#allocation3 + $0x24] sm:$0xf]
        %v315 = vld [vmem:[#allocation3 + $0x28] sm:$0xf]
        %v316 = vld [vmem:[#allocation3 + $0x2c] sm:$0xf]
        %v317 = vld [vmem:[#allocation3 + $0x30] sm:$0xf]
        %v318 = vld [vmem:[#allocation3 + $0x34] sm:$0xf]
        %v319 = vld [vmem:[#allocation3 + $0x38] sm:$0xf]
        %v320 = vld [vmem:[#allocation3 + $0x3c] sm:$0xf]
        %v321 = vld [vmem:[#allocation2] sm:$0xf]
        %v322 = vld [vmem:[#allocation2 + $0x8] sm:$0xf]
        %v323 = vld [vmem:[#allocation2 + $0x10] sm:$0xf]
        %v324 = vld [vmem:[#allocation2 + $0x18] sm:$0xf]
        %v325 = vld [vmem:[#allocation2 + $0x20] sm:$0xf]
        %v326 = vld [vmem:[#allocation2 + $0x28] sm:$0xf]
        %v327 = vld [vmem:[#allocation2 + $0x30] sm:$0xf]
        %v328 = vld [vmem:[#allocation2 + $0x38] sm:$0xf]
        %v329 = vld [vmem:[#allocation2 + $0x40] sm:$0xf]
        %v330 = vld [vmem:[#allocation2 + $0x48] sm:$0xf]
        %v331 = vld [vmem:[#allocation2 + $0x50] sm:$0xf]
        %v332 = vld [vmem:[#allocation2 + $0x58] sm:$0xf]
        %v333 = vld [vmem:[#allocation2 + $0x60] sm:$0xf]
        %v334 = vld [vmem:[#allocation2 + $0x68] sm:$0xf]
        %v335 = vld [vmem:[#allocation2 + $0x70] sm:$0xf]
        %v336 = vld [vmem:[#allocation2 + $0x78] sm:$0xf]
        %v353 = vunpack.c.l.b16 %v305
        %v354 = vunpack.c.l.b16 %v306
        %v355 = vunpack.c.l.b16 %v307
        %v356 = vunpack.c.l.b16 %v308
        %v357 = vunpack.c.l.b16 %v309
        %v358 = vunpack.c.l.b16 %v310
        %v359 = vunpack.c.l.b16 %v311
        %v360 = vunpack.c.l.b16 %v312
        %v361 = vunpack.c.l.b16 %v313
        %v362 = vunpack.c.l.b16 %v314
        %v363 = vunpack.c.l.b16 %v315
        %v364 = vunpack.c.l.b16 %v316
        %v365 = vunpack.c.l.b16 %v317
        %v366 = vunpack.c.l.b16 %v318
        %v367 = vunpack.c.l.b16 %v319
        %v368 = vunpack.c.l.b16 %v320
        %v369 = vpack.c.b16 %v354, %v353
        %v370 = vpack.c.b16 %v356, %v355
        %v371 = vpack.c.b16 %v358, %v357
        %v372 = vpack.c.b16 %v360, %v359
        %v373 = vpack.c.b16 %v362, %v361
        %v374 = vpack.c.b16 %v364, %v363
        %v375 = vpack.c.b16 %v366, %v365
        %v376 = vpack.c.b16 %v368, %v367
        %v401 = vunpack.c.l.b16 %v321
        %v402 = vunpack.c.l.b16 %v322
        %v403 = vunpack.c.l.b16 %v323
        %v404 = vunpack.c.l.b16 %v324
        %v405 = vunpack.c.l.b16 %v325
        %v406 = vunpack.c.l.b16 %v326
        %v407 = vunpack.c.l.b16 %v327
        %v408 = vunpack.c.l.b16 %v328
        %v409 = vunpack.c.l.b16 %v329
        %v410 = vunpack.c.l.b16 %v330
        %v411 = vunpack.c.l.b16 %v331
        %v412 = vunpack.c.l.b16 %v332
        %v413 = vunpack.c.l.b16 %v333
        %v414 = vunpack.c.l.b16 %v334
        %v415 = vunpack.c.l.b16 %v335
        %v416 = vunpack.c.l.b16 %v336
        %v417 = vpack.c.b16 %v402, %v401
        %v418 = vpack.c.b16 %v404, %v403
        %v419 = vpack.c.b16 %v406, %v405
        %v420 = vpack.c.b16 %v408, %v407
        %v421 = vpack.c.b16 %v410, %v409
        %v422 = vpack.c.b16 %v412, %v411
        %v423 = vpack.c.b16 %v414, %v413
        %v424 = vpack.c.b16 %v416, %v415
        %433 = vmatpush.bf16.msra.mxu0 %v424
        %434 = vmatpush.bf16.msra.mxu0 %v423
        %435 = vmatpush.bf16.msra.mxu0 %v422
        %436 = vmatpush.bf16.msra.mxu0 %v421
        %437 = vmatpush.bf16.msra.mxu0 %v420
        %438 = vmatpush.bf16.msra.mxu0 %v419
        %439 = vmatpush.bf16.msra.mxu0 %v418
        %440 = vmatpush.bf16.msra.mxu0 %v417
        %441 = vmatmul.bf16.gmra.mxu0 %v369
        %v442 = vpop.f32.mrf.mxu0
        %v443 = vadd.f32 0.0, %v442
        %v444 = vpop.f32.mrf.mxu0
        %v445 = vadd.f32 0.0, %v444
        %446 = vmatmul.bf16.gmra.mxu0 %v370
        %v447 = vpop.f32.mrf.mxu0
        %v448 = vadd.f32 0.0, %v447
        %v449 = vpop.f32.mrf.mxu0
        %v450 = vadd.f32 0.0, %v449
        %451 = vmatmul.bf16.gmra.mxu0 %v371
        %v452 = vpop.f32.mrf.mxu0
        %v453 = vadd.f32 0.0, %v452
        %v454 = vpop.f32.mrf.mxu0
        %v455 = vadd.f32 0.0, %v454
        %456 = vmatmul.bf16.gmra.mxu0 %v372
        %v457 = vpop.f32.mrf.mxu0
        %v458 = vadd.f32 0.0, %v457
        %v459 = vpop.f32.mrf.mxu0
        %v460 = vadd.f32 0.0, %v459
        %461 = vmatmul.bf16.gmra.mxu0 %v373
        %v462 = vpop.f32.mrf.mxu0
        %v463 = vadd.f32 0.0, %v462
        %v464 = vpop.f32.mrf.mxu0
        %v465 = vadd.f32 0.0, %v464
        %466 = vmatmul.bf16.gmra.mxu0 %v374
        %v467 = vpop.f32.mrf.mxu0
        %v468 = vadd.f32 0.0, %v467
        %v469 = vpop.f32.mrf.mxu0
        %v470 = vadd.f32 0.0, %v469
        %471 = vmatmul.bf16.gmra.mxu0 %v375
        %v472 = vpop.f32.mrf.mxu0
        %v473 = vadd.f32 0.0, %v472
        %v474 = vpop.f32.mrf.mxu0
        %v475 = vadd.f32 0.0, %v474
        %476 = vmatmul.bf16.gmra.mxu0 %v376
        %v477 = vpop.f32.mrf.mxu0
        %v478 = vadd.f32 0.0, %v477
        %v479 = vpop.f32.mrf.mxu0
        %v480 = vadd.f32 0.0, %v479
        %481 = vdwg.mxu0
        %v482 = vpack.c.bf16 %v443, %v443
        %v483 = vpack.c.bf16 %v445, %v445
        %v484 = vpack.c.bf16 %v448, %v448
        %v485 = vpack.c.bf16 %v450, %v450
        %v486 = vpack.c.bf16 %v453, %v453
        %v487 = vpack.c.bf16 %v455, %v455
        %v488 = vpack.c.bf16 %v458, %v458
        %v489 = vpack.c.bf16 %v460, %v460
        %v490 = vpack.c.bf16 %v463, %v463
        %v491 = vpack.c.bf16 %v465, %v465
        %v492 = vpack.c.bf16 %v468, %v468
        %v493 = vpack.c.bf16 %v470, %v470
        %v494 = vpack.c.bf16 %v473, %v473
        %v495 = vpack.c.bf16 %v475, %v475
        %v496 = vpack.c.bf16 %v478, %v478
        %v497 = vpack.c.bf16 %v480, %v480
        %498 = vst [vmem:[#allocation2 + $0x4] sm:$0xf] %v482
        %499 = vst [vmem:[#allocation2 + $0xc] sm:$0xf] %v483
        %500 = vst [vmem:[#allocation2 + $0x14] sm:$0xf] %v484
        %501 = vst [vmem:[#allocation2 + $0x1c] sm:$0xf] %v485
        %502 = vst [vmem:[#allocation2 + $0x24] sm:$0xf] %v486
        %503 = vst [vmem:[#allocation2 + $0x2c] sm:$0xf] %v487
        %504 = vst [vmem:[#allocation2 + $0x34] sm:$0xf] %v488
        %505 = vst [vmem:[#allocation2 + $0x3c] sm:$0xf] %v489
        %506 = vst [vmem:[#allocation2 + $0x44] sm:$0xf] %v490
        %507 = vst [vmem:[#allocation2 + $0x4c] sm:$0xf] %v491
        %508 = vst [vmem:[#allocation2 + $0x54] sm:$0xf] %v492
        %509 = vst [vmem:[#allocation2 + $0x5c] sm:$0xf] %v493
        %510 = vst [vmem:[#allocation2 + $0x64] sm:$0xf] %v494
        %511 = vst [vmem:[#allocation2 + $0x6c] sm:$0xf] %v495
        %512 = vst [vmem:[#allocation2 + $0x74] sm:$0xf] %v496
        %513 = vst [vmem:[#allocation2 + $0x7c] sm:$0xf] %v497
        %v514 = vld [vmem:[#allocation2] sm:$0xff]
        %v515 = vld [vmem:[#allocation2 + $0x8] sm:$0xff]
        %v516 = vld [vmem:[#allocation2 + $0x10] sm:$0xff]
        %v517 = vld [vmem:[#allocation2 + $0x18] sm:$0xff]
        %v518 = vld [vmem:[#allocation2 + $0x20] sm:$0xff]
        %v519 = vld [vmem:[#allocation2 + $0x28] sm:$0xff]
        %v520 = vld [vmem:[#allocation2 + $0x30] sm:$0xff]
        %v521 = vld [vmem:[#allocation2 + $0x38] sm:$0xff]
        %v522 = vld [vmem:[#allocation2 + $0x40] sm:$0xff]
        %v523 = vld [vmem:[#allocation2 + $0x48] sm:$0xff]
        %v524 = vld [vmem:[#allocation2 + $0x50] sm:$0xff]
        %v525 = vld [vmem:[#allocation2 + $0x58] sm:$0xff]
        %v526 = vld [vmem:[#allocation2 + $0x60] sm:$0xff]
        %v527 = vld [vmem:[#allocation2 + $0x68] sm:$0xff]
        %v528 = vld [vmem:[#allocation2 + $0x70] sm:$0xff]
        %v529 = vld [vmem:[#allocation2 + $0x78] sm:$0xff]
        %v530 = vld [vmem:[%s235] sm:$0xf]
        %v531 = vld [vmem:[%s235 + $0x4] sm:$0xf]
        %v532 = vld [vmem:[%s235 + $0x8] sm:$0xf]
        %v533 = vld [vmem:[%s235 + $0xc] sm:$0xf]
        %v534 = vld [vmem:[%s235 + $0x10] sm:$0xf]
        %v535 = vld [vmem:[%s235 + $0x14] sm:$0xf]
        %v536 = vld [vmem:[%s235 + $0x18] sm:$0xf]
        %v537 = vld [vmem:[%s235 + $0x1c] sm:$0xf]
        %v538 = vld [vmem:[%s235 + $0x20] sm:$0xf]
        %v539 = vld [vmem:[%s235 + $0x24] sm:$0xf]
        %v540 = vld [vmem:[%s235 + $0x28] sm:$0xf]
        %v541 = vld [vmem:[%s235 + $0x2c] sm:$0xf]
        %v542 = vld [vmem:[%s235 + $0x30] sm:$0xf]
        %v543 = vld [vmem:[%s235 + $0x34] sm:$0xf]
        %v544 = vld [vmem:[%s235 + $0x38] sm:$0xf]
        %v545 = vld [vmem:[%s235 + $0x3c] sm:$0xf]
        %v546 = vld [vmem:[%s235 + $0x40] sm:$0xf]
        %v547 = vld [vmem:[%s235 + $0x44] sm:$0xf]
        %v548 = vld [vmem:[%s235 + $0x48] sm:$0xf]
        %v549 = vld [vmem:[%s235 + $0x4c] sm:$0xf]
        %v550 = vld [vmem:[%s235 + $0x50] sm:$0xf]
        %v551 = vld [vmem:[%s235 + $0x54] sm:$0xf]
        %v552 = vld [vmem:[%s235 + $0x58] sm:$0xf]
        %v553 = vld [vmem:[%s235 + $0x5c] sm:$0xf]
        %v554 = vld [vmem:[%s235 + $0x60] sm:$0xf]
        %v555 = vld [vmem:[%s235 + $0x64] sm:$0xf]
        %v556 = vld [vmem:[%s235 + $0x68] sm:$0xf]
        %v557 = vld [vmem:[%s235 + $0x6c] sm:$0xf]
        %v558 = vld [vmem:[%s235 + $0x70] sm:$0xf]
        %v559 = vld [vmem:[%s235 + $0x74] sm:$0xf]
        %v560 = vld [vmem:[%s235 + $0x78] sm:$0xf]
        %v561 = vld [vmem:[%s235 + $0x7c] sm:$0xf]
        %v562 = vld [vmem:[%s244] sm:$0x1]
        %v564 = vperm.slane %v562, 0
        %v582 = vunpack.c.l.b16 %v514
        %v583 = vunpack.c.h.b16 %v514
        %v584 = vunpack.c.l.b16 %v515
        %v585 = vunpack.c.h.b16 %v515
        %v586 = vunpack.c.l.b16 %v516
        %v587 = vunpack.c.h.b16 %v516
        %v588 = vunpack.c.l.b16 %v517
        %v589 = vunpack.c.h.b16 %v517
        %v590 = vunpack.c.l.b16 %v518
        %v591 = vunpack.c.h.b16 %v518
        %v592 = vunpack.c.l.b16 %v519
        %v593 = vunpack.c.h.b16 %v519
        %v594 = vunpack.c.l.b16 %v520
        %v595 = vunpack.c.h.b16 %v520
        %v596 = vunpack.c.l.b16 %v521
        %v597 = vunpack.c.h.b16 %v521
        %v598 = vunpack.c.l.b16 %v522
        %v599 = vunpack.c.h.b16 %v522
        %v600 = vunpack.c.l.b16 %v523
        %v601 = vunpack.c.h.b16 %v523
        %v602 = vunpack.c.l.b16 %v524
        %v603 = vunpack.c.h.b16 %v524
        %v604 = vunpack.c.l.b16 %v525
        %v605 = vunpack.c.h.b16 %v525
        %v606 = vunpack.c.l.b16 %v526
        %v607 = vunpack.c.h.b16 %v526
        %v608 = vunpack.c.l.b16 %v527
        %v609 = vunpack.c.h.b16 %v527
        %v610 = vunpack.c.l.b16 %v528
        %v611 = vunpack.c.h.b16 %v528
        %v612 = vunpack.c.l.b16 %v529
        %v613 = vunpack.c.h.b16 %v529
        %v614 = vpack.c.b16 %v584, %v582
        %v615 = vpack.c.b16 %v585, %v583
        %v616 = vpack.c.b16 %v588, %v586
        %v617 = vpack.c.b16 %v589, %v587
        %v618 = vpack.c.b16 %v592, %v590
        %v619 = vpack.c.b16 %v593, %v591
        %v620 = vpack.c.b16 %v596, %v594
        %v621 = vpack.c.b16 %v597, %v595
        %v622 = vpack.c.b16 %v600, %v598
        %v623 = vpack.c.b16 %v601, %v599
        %v624 = vpack.c.b16 %v604, %v602
        %v625 = vpack.c.b16 %v605, %v603
        %v626 = vpack.c.b16 %v608, %v606
        %v627 = vpack.c.b16 %v609, %v607
        %v628 = vpack.c.b16 %v612, %v610
        %v629 = vpack.c.b16 %v613, %v611
        %v678 = vunpack.c.l.b16 %v530
        %v679 = vunpack.c.l.b16 %v531
        %v680 = vunpack.c.l.b16 %v532
        %v681 = vunpack.c.l.b16 %v533
        %v682 = vunpack.c.l.b16 %v534
        %v683 = vunpack.c.l.b16 %v535
        %v684 = vunpack.c.l.b16 %v536
        %v685 = vunpack.c.l.b16 %v537
        %v686 = vunpack.c.l.b16 %v538
        %v687 = vunpack.c.l.b16 %v539
        %v688 = vunpack.c.l.b16 %v540
        %v689 = vunpack.c.l.b16 %v541
        %v690 = vunpack.c.l.b16 %v542
        %v691 = vunpack.c.l.b16 %v543
        %v692 = vunpack.c.l.b16 %v544
        %v693 = vunpack.c.l.b16 %v545
        %v694 = vunpack.c.l.b16 %v546
        %v695 = vunpack.c.l.b16 %v547
        %v696 = vunpack.c.l.b16 %v548
        %v697 = vunpack.c.l.b16 %v549
        %v698 = vunpack.c.l.b16 %v550
        %v699 = vunpack.c.l.b16 %v551
        %v700 = vunpack.c.l.b16 %v552
        %v701 = vunpack.c.l.b16 %v553
        %v702 = vunpack.c.l.b16 %v554
        %v703 = vunpack.c.l.b16 %v555
        %v704 = vunpack.c.l.b16 %v556
        %v705 = vunpack.c.l.b16 %v557
        %v706 = vunpack.c.l.b16 %v558
        %v707 = vunpack.c.l.b16 %v559
        %v708 = vunpack.c.l.b16 %v560
        %v709 = vunpack.c.l.b16 %v561
        %v710 = vpack.c.b16 %v679, %v678
        %v711 = vpack.c.b16 %v681, %v680
        %v712 = vpack.c.b16 %v683, %v682
        %v713 = vpack.c.b16 %v685, %v684
        %v714 = vpack.c.b16 %v687, %v686
        %v715 = vpack.c.b16 %v689, %v688
        %v716 = vpack.c.b16 %v691, %v690
        %v717 = vpack.c.b16 %v693, %v692
        %v718 = vpack.c.b16 %v695, %v694
        %v719 = vpack.c.b16 %v697, %v696
        %v720 = vpack.c.b16 %v699, %v698
        %v721 = vpack.c.b16 %v701, %v700
        %v722 = vpack.c.b16 %v703, %v702
        %v723 = vpack.c.b16 %v705, %v704
        %v724 = vpack.c.b16 %v707, %v706
        %v725 = vpack.c.b16 %v709, %v708
        %742 = vmatpush.bf16.msra.mxu0 %v717
        %743 = vmatpush.bf16.msra.mxu0 %v716
        %744 = vmatpush.bf16.msra.mxu0 %v715
        %745 = vmatpush.bf16.msra.mxu0 %v714
        %746 = vmatpush.bf16.msra.mxu0 %v713
        %747 = vmatpush.bf16.msra.mxu0 %v712
        %748 = vmatpush.bf16.msra.mxu0 %v711
        %749 = vmatpush.bf16.msra.mxu0 %v710
        %750 = vmatmul.bf16.gmra.mxu0 %v614
        %v751 = vpop.f32.mrf.mxu0
        %v752 = vadd.f32 %v564, %v751
        %v753 = vpop.f32.mrf.mxu0
        %v754 = vadd.f32 %v564, %v753
        %755 = vmatmul.bf16.gmra.mxu0 %v616
        %v756 = vpop.f32.mrf.mxu0
        %v757 = vadd.f32 %v564, %v756
        %v758 = vpop.f32.mrf.mxu0
        %v759 = vadd.f32 %v564, %v758
        %760 = vmatmul.bf16.gmra.mxu0 %v618
        %v761 = vpop.f32.mrf.mxu0
        %v762 = vadd.f32 %v564, %v761
        %v763 = vpop.f32.mrf.mxu0
        %v764 = vadd.f32 %v564, %v763
        %765 = vmatmul.bf16.gmra.mxu0 %v620
        %v766 = vpop.f32.mrf.mxu0
        %v767 = vadd.f32 %v564, %v766
        %v768 = vpop.f32.mrf.mxu0
        %v769 = vadd.f32 %v564, %v768
        %770 = vmatmul.bf16.gmra.mxu0 %v622
        %v771 = vpop.f32.mrf.mxu0
        %v772 = vadd.f32 %v564, %v771
        %v773 = vpop.f32.mrf.mxu0
        %v774 = vadd.f32 %v564, %v773
        %775 = vmatmul.bf16.gmra.mxu0 %v624
        %v776 = vpop.f32.mrf.mxu0
        %v777 = vadd.f32 %v564, %v776
        %v778 = vpop.f32.mrf.mxu0
        %v779 = vadd.f32 %v564, %v778
        %780 = vmatmul.bf16.gmra.mxu0 %v626
        %v781 = vpop.f32.mrf.mxu0
        %v782 = vadd.f32 %v564, %v781
        %v783 = vpop.f32.mrf.mxu0
        %v784 = vadd.f32 %v564, %v783
        %785 = vmatmul.bf16.gmra.mxu0 %v628
        %v786 = vpop.f32.mrf.mxu0
        %v787 = vadd.f32 %v564, %v786
        %v788 = vpop.f32.mrf.mxu0
        %v789 = vadd.f32 %v564, %v788
        %790 = vdwg.mxu0
        %791 = vmatpush.bf16.msra.mxu0 %v725
        %792 = vmatpush.bf16.msra.mxu0 %v724
        %793 = vmatpush.bf16.msra.mxu0 %v723
        %794 = vmatpush.bf16.msra.mxu0 %v722
        %795 = vmatpush.bf16.msra.mxu0 %v721
        %796 = vmatpush.bf16.msra.mxu0 %v720
        %797 = vmatpush.bf16.msra.mxu0 %v719
        %798 = vmatpush.bf16.msra.mxu0 %v718
        %799 = vmatmul.bf16.gmra.mxu0 %v615
        %v800 = vpop.f32.mrf.mxu0
        %v801 = vadd.f32 %v752, %v800
        %v802 = vpop.f32.mrf.mxu0
        %v803 = vadd.f32 %v754, %v802
        %804 = vmatmul.bf16.gmra.mxu0 %v617
        %v805 = vpop.f32.mrf.mxu0
        %v806 = vadd.f32 %v757, %v805
        %v807 = vpop.f32.mrf.mxu0
        %v808 = vadd.f32 %v759, %v807
        %809 = vmatmul.bf16.gmra.mxu0 %v619
        %v810 = vpop.f32.mrf.mxu0
        %v811 = vadd.f32 %v762, %v810
        %v812 = vpop.f32.mrf.mxu0
        %v813 = vadd.f32 %v764, %v812
        %814 = vmatmul.bf16.gmra.mxu0 %v621
        %v815 = vpop.f32.mrf.mxu0
        %v816 = vadd.f32 %v767, %v815
        %v817 = vpop.f32.mrf.mxu0
        %v818 = vadd.f32 %v769, %v817
        %819 = vmatmul.bf16.gmra.mxu0 %v623
        %v820 = vpop.f32.mrf.mxu0
        %v821 = vadd.f32 %v772, %v820
        %v822 = vpop.f32.mrf.mxu0
        %v823 = vadd.f32 %v774, %v822
        %824 = vmatmul.bf16.gmra.mxu0 %v625
        %v825 = vpop.f32.mrf.mxu0
        %v826 = vadd.f32 %v777, %v825
        %v827 = vpop.f32.mrf.mxu0
        %v828 = vadd.f32 %v779, %v827
        %829 = vmatmul.bf16.gmra.mxu0 %v627
        %v830 = vpop.f32.mrf.mxu0
        %v831 = vadd.f32 %v782, %v830
        %v832 = vpop.f32.mrf.mxu0
        %v833 = vadd.f32 %v784, %v832
        %834 = vmatmul.bf16.gmra.mxu0 %v629
        %v835 = vpop.f32.mrf.mxu0
        %v836 = vadd.f32 %v787, %v835
        %v837 = vpop.f32.mrf.mxu0
        %v838 = vadd.f32 %v789, %v837
        %839 = vdwg.mxu0
        %p840 = scmp.eq.s32.totalorder %s18, 2
        %p841 = scmp.ne.s32.totalorder %s18, 2
        // Predicated region
        $region57: #{tpu_custom_call.1} parent=35 // pred_check
          %p842 = pneg %p841
        $region58: #{tpu_custom_call.1} parent=35 // pred_check_branch
          %844 = sbr.rel (%p842) target = $region60
        $region59: #{tpu_custom_call.1} parent=35 // pred_region
          %v845 = vmax.f32 %v801, 0.0
          %v846 = vmax.f32 %v803, 0.0
          %v847 = vmax.f32 %v806, 0.0
          %v848 = vmax.f32 %v808, 0.0
          %v849 = vmax.f32 %v811, 0.0
          %v850 = vmax.f32 %v813, 0.0
          %v851 = vmax.f32 %v816, 0.0
          %v852 = vmax.f32 %v818, 0.0
          %v853 = vmax.f32 %v821, 0.0
          %v854 = vmax.f32 %v823, 0.0
          %v855 = vmax.f32 %v826, 0.0
          %v856 = vmax.f32 %v828, 0.0
          %v857 = vmax.f32 %v831, 0.0
          %v858 = vmax.f32 %v833, 0.0
          %v859 = vmax.f32 %v836, 0.0
          %v860 = vmax.f32 %v838, 0.0
          %v861 = vpack.c.bf16 %v845, %v845
          %v862 = vpack.c.bf16 %v846, %v846
          %v863 = vpack.c.bf16 %v847, %v847
          %v864 = vpack.c.bf16 %v848, %v848
          %v865 = vpack.c.bf16 %v849, %v849
          %v866 = vpack.c.bf16 %v850, %v850
          %v867 = vpack.c.bf16 %v851, %v851
          %v868 = vpack.c.bf16 %v852, %v852
          %v869 = vpack.c.bf16 %v853, %v853
          %v870 = vpack.c.bf16 %v854, %v854
          %v871 = vpack.c.bf16 %v855, %v855
          %v872 = vpack.c.bf16 %v856, %v856
          %v873 = vpack.c.bf16 %v857, %v857
          %v874 = vpack.c.bf16 %v858, %v858
          %v875 = vpack.c.bf16 %v859, %v859
          %v876 = vpack.c.bf16 %v860, %v860
          %877 = vst [vmem:[#allocation2] sm:$0xf] %v861
          %878 = vst [vmem:[#allocation2 + $0x8] sm:$0xf] %v862
          %879 = vst [vmem:[#allocation2 + $0x10] sm:$0xf] %v863
          %880 = vst [vmem:[#allocation2 + $0x18] sm:$0xf] %v864
          %881 = vst [vmem:[#allocation2 + $0x20] sm:$0xf] %v865
          %882 = vst [vmem:[#allocation2 + $0x28] sm:$0xf] %v866
          %883 = vst [vmem:[#allocation2 + $0x30] sm:$0xf] %v867
          %884 = vst [vmem:[#allocation2 + $0x38] sm:$0xf] %v868
          %885 = vst [vmem:[#allocation2 + $0x40] sm:$0xf] %v869
          %886 = vst [vmem:[#allocation2 + $0x48] sm:$0xf] %v870
          %887 = vst [vmem:[#allocation2 + $0x50] sm:$0xf] %v871
          %888 = vst [vmem:[#allocation2 + $0x58] sm:$0xf] %v872
          %889 = vst [vmem:[#allocation2 + $0x60] sm:$0xf] %v873
          %890 = vst [vmem:[#allocation2 + $0x68] sm:$0xf] %v874
          %891 = vst [vmem:[#allocation2 + $0x70] sm:$0xf] %v875
          %892 = vst [vmem:[#allocation2 + $0x78] sm:$0xf] %v876
        $region60: #{tpu_custom_call.1} parent=35 // pred_fallthru
          _
        // Predicated region
        $region61: #{tpu_custom_call.1} parent=35 // pred_check
          %p893 = pneg %p840
        $region62: #{tpu_custom_call.1} parent=35 // pred_check_branch
          %895 = sbr.rel (%p893) target = $region64
        $region63: #{tpu_custom_call.1} parent=35 // pred_region
          %896 = vst [vmem:[#allocation10] sm:$0xff] %v801
          %897 = vst [vmem:[#allocation10 + $0x8] sm:$0xff] %v803
          %898 = vst [vmem:[#allocation10 + $0x10] sm:$0xff] %v806
          %899 = vst [vmem:[#allocation10 + $0x18] sm:$0xff] %v808
          %900 = vst [vmem:[#allocation10 + $0x20] sm:$0xff] %v811
          %901 = vst [vmem:[#allocation10 + $0x28] sm:$0xff] %v813
          %902 = vst [vmem:[#allocation10 + $0x30] sm:$0xff] %v816
          %903 = vst [vmem:[#allocation10 + $0x38] sm:$0xff] %v818
          %904 = vst [vmem:[#allocation10 + $0x40] sm:$0xff] %v821
          %905 = vst [vmem:[#allocation10 + $0x48] sm:$0xff] %v823
          %906 = vst [vmem:[#allocation10 + $0x50] sm:$0xff] %v826
          %907 = vst [vmem:[#allocation10 + $0x58] sm:$0xff] %v828
          %908 = vst [vmem:[#allocation10 + $0x60] sm:$0xff] %v831
          %909 = vst [vmem:[#allocation10 + $0x68] sm:$0xff] %v833
          %910 = vst [vmem:[#allocation10 + $0x70] sm:$0xff] %v836
          %911 = vst [vmem:[#allocation10 + $0x78] sm:$0xff] %v838
        $region64: #{tpu_custom_call.1} parent=35 // pred_fallthru
          _
        // Predicated region
        $region65: #{tpu_custom_call.1} parent=35 // pred_check
          %p912 = pneg %p125
        $region66: #{tpu_custom_call.1} parent=35 // pred_check_branch
          %914 = sbr.rel (%p912) target = $region68
        $region67: #{tpu_custom_call.1} parent=35 // pred_region
          %916 = vsyncadd [#allocation5], 0
          %s917 = sshll.u32 [#allocation10], 4
          %s918 = int_to_ptr.vmem [resolvable:$true] %s917
          %s919 = sshll.u32 %s4, 4
          %s920 = int_to_ptr.hbm [resolvable:$true] %s919
          %925 = dma.vmem_to_hbm [thread:$0]  %s918, 2048, %s920, [#allocation5], 128, 128, 8
        $region68: #{tpu_custom_call.1} parent=35 // pred_fallthru
          _
        // Predicated region
        $region69: #{tpu_custom_call.1} parent=35 // pred_check
          %p926 = pneg %p125
        $region70: #{tpu_custom_call.1} parent=35 // pred_check_branch
          %928 = sbr.rel (%p926) target = $region72
        $region71: #{tpu_custom_call.1} parent=35 // pred_region
          %930 = dma.done [#allocation5], 2048
        $region72: #{tpu_custom_call.1} parent=35 // pred_fallthru
          _
      $region36: #{tpu_custom_call.1} parent=5 // pred_fallthru
        _
      %p931 = scmp.le.s32.totalorder 2, %s13
      // Predicated region
      $region73: #{tpu_custom_call.1} parent=5 // pred_check
        %p932 = pneg %p931
      $region74: #{tpu_custom_call.1} parent=5 // pred_check_branch
        %934 = sbr.rel (%p932) target = $region76
      $region75: #{tpu_custom_call.1} parent=5 // pred_region
        %s935 = ssub.s32 %s13, 2
      $region76: #{tpu_custom_call.1} parent=5 // pred_fallthru
        _
    $region6: #{tpu_custom_call.1} parent=1 // loop_footer
      %s17 = sadd.s32 1, %s13
    $region7: #{tpu_custom_call.1} parent=1 // loop_footer_branch
      %12 = sbr.rel target = $region3
    $region8: #{tpu_custom_call.1} parent=1 // loop_exit
      _
    %936 = vsyncpa [#allocation4], 1
    %s937 = scalar_lea.sflag [#allocation4], 1
    %938 = vsyncpa %s937, 1
    %939 = vsyncpa [#allocation7], 1
    %940 = vsyncpa [#allocation5], 1
    %s941 = scalar_lea.sflag [#allocation5], 1
    %942 = vsyncpa %s941, 1

</llo_original>
